<compile_context>
chip_gen: v7x
topology: tpu7x:2x2x1
jax: 0.10.0
libtpu: 0.0.40
codegen_flags: <defaults>
</compile_context>

<pallas_src>
import functools

import jax
import jax.numpy as jnp
from jax.experimental import pallas as pl
from jax.experimental.pallas import tpu as pltpu

# ----- deterministic "config" ------------------------------------------------
ALPHA = 0.92
BETA = 0.08
POS_WEIGHT = 3.0
LABEL_SMOOTHING = 0.0  # kept 0.0, matching the .get(..., 0.0) default


# ----- Pallas kernel: all of the reduction / elementwise hot path -------------
def _multitask_loss_kernel(slab_ref, out_ref, *, num_classes):
    """slab_ref: (B, C+3) f32  [type_logits | change_logit | change_tgt | type_tgt]
       out_ref : (1, 1)   f32  combined loss (SMEM)"""
    C = num_classes
    slab = slab_ref[...]                       # single tiny VMEM load
    logits = slab[:, 0:C]                      # (B, C) tire-type logits
    x = slab[:, C:C + 1]                       # (B, 1) tire-change logit
    y = slab[:, C + 1:C + 2]                   # (B, 1) tire-change target (float)
    tgt = slab[:, C + 2:C + 3]                 # (B, 1) tire-type class index (whole f32)

    # --- BCEWithLogitsLoss(pos_weight), mean reduction over B ---
    # single stable softplus; softplus(-x) = softplus(x) - x
    sp = jnp.maximum(x, 0.0) + jnp.log1p(jnp.exp(-jnp.abs(x)))          # softplus(x)
    bce = sp * (1.0 + (POS_WEIGHT - 1.0) * y) - POS_WEIGHT * y * x      # per-element
    tire_change_loss = jnp.sum(bce) * jnp.float32(1.0 / x.shape[0])     # mean over B

    # --- CrossEntropyLoss on the masked (tire_change == 1) subset ---
    class_ids = jax.lax.broadcasted_iota(jnp.int32, logits.shape, 1)    # (B, C)
    onehot = (class_ids == tgt.astype(jnp.int32)).astype(jnp.float32)   # (B, C)

    m = jnp.max(logits, axis=-1, keepdims=True)                          # (B, 1)
    lse = m + jnp.log(jnp.sum(jnp.exp(logits - m), axis=-1, keepdims=True))  # (B, 1)
    tgt_logit = jnp.sum(logits * onehot, axis=-1, keepdims=True)         # (B, 1)
    ce = lse - tgt_logit                                                 # per-example CE

    # mask exactly like torch: targets['tire_change'] == 1 (not the raw float label)
    mask = (y == 1.0).astype(jnp.float32)                                # (B, 1)
    masked_sum = jnp.sum(ce * mask)
    count = jnp.sum(mask)
    tire_type_loss = jnp.where(count > 0.0,
                               masked_sum / jnp.maximum(count, 1.0),
                               0.0)

    out_ref[0, 0] = ALPHA * tire_change_loss + BETA * tire_type_loss


# ----- wrapper ----------------------------------------------------------------
def lstm_multitask_loss(predictions, targets):
    """predictions: {'tire_change_logits': (B,), 'tire_type_logits': (B, C)}
       targets:     {'tire_change': (B,) int, 'tire_type': (B,) int}"""
    change_logits = predictions["tire_change_logits"]
    type_logits = predictions["tire_type_logits"]
    change_tgt = targets["tire_change"]
    type_tgt = targets["tire_type"]

    B = change_logits.shape[0]
    C = type_logits.shape[1]

    # ONE (B, C+3) f32 slab: single concat in the wrapper, single DMA into the
    # kernel, no transpose.  Class indices are whole numbers, so storing them as
    # f32 values and converting back in-kernel is exact (no bitcast needed).
    slab = jnp.concatenate(
        [
            type_logits.astype(jnp.float32),                  # (B, C)
            change_logits.astype(jnp.float32)[:, None],       # (B, 1)
            change_tgt.astype(jnp.float32)[:, None],          # (B, 1)
            type_tgt.astype(jnp.float32)[:, None],            # (B, 1)
        ],
        axis=1,
    )                                                         # (B, C+3)

    out = pl.pallas_call(
        functools.partial(_multitask_loss_kernel, num_classes=C),
        out_shape=jax.ShapeDtypeStruct((1, 1), jnp.float32),
        in_specs=[pl.BlockSpec(memory_space=pltpu.MemorySpace.VMEM)],
        out_specs=pl.BlockSpec(memory_space=pltpu.MemorySpace.SMEM),
    )(slab)
    return out[0, 0]


# ----- pure-JAX reference for verification ------------------------------------
def _reference_loss(predictions, targets):
    x = predictions["tire_change_logits"].astype(jnp.float32)
    y = targets["tire_change"].astype(jnp.float32)
    sp_pos = jnp.maximum(x, 0.0) + jnp.log1p(jnp.exp(-jnp.abs(x)))
    sp_neg = jnp.maximum(-x, 0.0) + jnp.log1p(jnp.exp(-jnp.abs(x)))
    bce = jnp.mean(POS_WEIGHT * y * sp_neg + (1.0 - y) * sp_pos)

    logits = predictions["tire_type_logits"].astype(jnp.float32)
    logp = jax.nn.log_softmax(logits, axis=-1)
    ce = -jnp.take_along_axis(logp, targets["tire_type"][:, None], axis=-1)[:, 0]
    mask = (targets["tire_change"] == 1).astype(jnp.float32)
    count = jnp.sum(mask)
    type_loss = jnp.where(count > 0, jnp.sum(ce * mask) / jnp.maximum(count, 1.0), 0.0)
    return ALPHA * bce + BETA * type_loss


if __name__ == "__main__":
    key = jax.random.PRNGKey(0)
    k1, k2, k3, k4 = jax.random.split(key, 4)

    B, C = 16, 8  # batch, number of tire types

    predictions = {
        "tire_change_logits": jax.random.normal(k1, (B,), dtype=jnp.float32),
        "tire_type_logits": jax.random.normal(k2, (B, C), dtype=jnp.float32),
    }
    targets = {
        "tire_change": jax.random.bernoulli(k3, 0.4, (B,)).astype(jnp.int32),
        "tire_type": jax.random.randint(k4, (B,), 0, C, dtype=jnp.int32),
    }

    loss = jax.block_until_ready(lstm_multitask_loss(predictions, targets))
    ref = jax.block_until_ready(_reference_loss(predictions, targets))

    assert jnp.allclose(loss, ref, rtol=1e-5, atol=1e-5), (loss, ref)
    print("KERNEL_OK")
</pallas_src>

<mosaic_0001>
module attributes {stable_mosaic.version = 11 : i64} {
  func.func @_multitask_loss_kernel(%arg0: memref<16x11xf32, #tpu.memory_space<vmem>>, %arg1: memref<1x1xf32, #tpu.memory_space<smem>>) attributes {dimension_semantics = [], scalar_prefetch = 0 : i64, scratch_operands = 0 : i64, tpu.core_type = #tpu.core_type<tc>} {
    %c0 = arith.constant 0 : index
    %c0_0 = arith.constant 0 : index
    %0 = vector.load %arg0[%c0, %c0_0] : memref<16x11xf32, #tpu.memory_space<vmem>>, vector<16x11xf32>
    %1 = vector.extract_strided_slice %0 {offsets = [0, 0], sizes = [16, 8], strides = [1, 1]} : vector<16x11xf32> to vector<16x8xf32>
    %2 = vector.extract_strided_slice %0 {offsets = [0, 8], sizes = [16, 1], strides = [1, 1]} : vector<16x11xf32> to vector<16x1xf32>
    %3 = vector.extract_strided_slice %0 {offsets = [0, 9], sizes = [16, 1], strides = [1, 1]} : vector<16x11xf32> to vector<16x1xf32>
    %4 = vector.extract_strided_slice %0 {offsets = [0, 10], sizes = [16, 1], strides = [1, 1]} : vector<16x11xf32> to vector<16x1xf32>
    %cst = arith.constant 0.000000e+00 : f32
    %5 = vector.broadcast %cst : f32 to vector<16x1xf32>
    %6 = arith.maximumf %2, %5 : vector<16x1xf32>
    %7 = math.absf %2 : vector<16x1xf32>
    %cst_1 = arith.constant 0.000000e+00 : f32
    %8 = vector.broadcast %cst_1 : f32 to vector<16x1xf32>
    %9 = arith.subf %8, %7 : vector<16x1xf32>
    %10 = math.exp %9 : vector<16x1xf32>
    %11 = math.log1p %10 : vector<16x1xf32>
    %12 = arith.addf %6, %11 : vector<16x1xf32>
    %cst_2 = arith.constant 2.000000e+00 : f32
    %13 = vector.broadcast %cst_2 : f32 to vector<16x1xf32>
    %14 = arith.mulf %13, %3 : vector<16x1xf32>
    %cst_3 = arith.constant 1.000000e+00 : f32
    %15 = vector.broadcast %cst_3 : f32 to vector<16x1xf32>
    %16 = arith.addf %15, %14 : vector<16x1xf32>
    %17 = arith.mulf %12, %16 : vector<16x1xf32>
    %cst_4 = arith.constant 3.000000e+00 : f32
    %18 = vector.broadcast %cst_4 : f32 to vector<16x1xf32>
    %19 = arith.mulf %18, %3 : vector<16x1xf32>
    %20 = arith.mulf %19, %2 : vector<16x1xf32>
    %21 = arith.subf %17, %20 : vector<16x1xf32>
    %22 = vector.shape_cast %21 : vector<16x1xf32> to vector<1x16x1xf32>
    %cst_5 = arith.constant dense<0.000000e+00> : vector<1xf32>
    %23 = vector.multi_reduction <add>, %22, %cst_5 [1, 2] : vector<1x16x1xf32> to vector<1xf32>
    %24 = vector.shape_cast %23 : vector<1xf32> to vector<1x1x1xf32>
    %25 = vector.extract %24[0, 0, 0] : f32 from vector<1x1x1xf32>
    %cst_6 = arith.constant 6.250000e-02 : f32
    %26 = arith.mulf %25, %cst_6 : f32
    %27 = tpu.iota {dimensions = array<i32: 1>} : vector<16x8xi32>
    %28 = arith.fptosi %4 : vector<16x1xf32> to vector<16x1xi32>
    %29 = vector.broadcast %28 : vector<16x1xi32> to vector<16x8xi32>
    %30 = arith.cmpi eq, %27, %29 : vector<16x8xi32>
    %31 = arith.extui %30 : vector<16x8xi1> to vector<16x8xi32>
    %32 = arith.sitofp %31 : vector<16x8xi32> to vector<16x8xf32>
    %cst_7 = arith.constant dense<0xFF800000> : vector<16xf32>
    %33 = vector.multi_reduction <maximumf>, %1, %cst_7 [1] : vector<16x8xf32> to vector<16xf32>
    %34 = vector.shape_cast %33 : vector<16xf32> to vector<16x1xf32>
    %35 = vector.broadcast %34 : vector<16x1xf32> to vector<16x8xf32>
    %36 = arith.subf %1, %35 : vector<16x8xf32>
    %37 = math.exp %36 : vector<16x8xf32>
    %cst_8 = arith.constant dense<0.000000e+00> : vector<16xf32>
    %38 = vector.multi_reduction <add>, %37, %cst_8 [1] : vector<16x8xf32> to vector<16xf32>
    %39 = vector.shape_cast %38 : vector<16xf32> to vector<16x1xf32>
    %40 = math.log %39 : vector<16x1xf32>
    %41 = arith.addf %34, %40 : vector<16x1xf32>
    %42 = arith.mulf %1, %32 : vector<16x8xf32>
    %cst_9 = arith.constant dense<0.000000e+00> : vector<16xf32>
    %43 = vector.multi_reduction <add>, %42, %cst_9 [1] : vector<16x8xf32> to vector<16xf32>
    %44 = vector.shape_cast %43 : vector<16xf32> to vector<16x1xf32>
    %45 = arith.subf %41, %44 : vector<16x1xf32>
    %cst_10 = arith.constant 1.000000e+00 : f32
    %46 = vector.broadcast %cst_10 : f32 to vector<16x1xf32>
    %47 = arith.cmpf oeq, %3, %46 : vector<16x1xf32>
    %48 = arith.extui %47 : vector<16x1xi1> to vector<16x1xi32>
    %49 = arith.sitofp %48 : vector<16x1xi32> to vector<16x1xf32>
    %50 = arith.mulf %45, %49 : vector<16x1xf32>
    %51 = vector.shape_cast %50 : vector<16x1xf32> to vector<1x16x1xf32>
    %cst_11 = arith.constant dense<0.000000e+00> : vector<1xf32>
    %52 = vector.multi_reduction <add>, %51, %cst_11 [1, 2] : vector<1x16x1xf32> to vector<1xf32>
    %53 = vector.shape_cast %52 : vector<1xf32> to vector<1x1x1xf32>
    %54 = vector.extract %53[0, 0, 0] : f32 from vector<1x1x1xf32>
    %55 = vector.shape_cast %49 : vector<16x1xf32> to vector<1x16x1xf32>
    %cst_12 = arith.constant dense<0.000000e+00> : vector<1xf32>
    %56 = vector.multi_reduction <add>, %55, %cst_12 [1, 2] : vector<1x16x1xf32> to vector<1xf32>
    %57 = vector.shape_cast %56 : vector<1xf32> to vector<1x1x1xf32>
    %58 = vector.extract %57[0, 0, 0] : f32 from vector<1x1x1xf32>
    %cst_13 = arith.constant 0.000000e+00 : f32
    %59 = arith.cmpf ogt, %58, %cst_13 : f32
    %cst_14 = arith.constant 1.000000e+00 : f32
    %60 = arith.maximumf %58, %cst_14 : f32
    %61 = arith.divf %54, %60 : f32
    %cst_15 = arith.constant 0.000000e+00 : f32
    %62 = arith.select %59, %61, %cst_15 : f32
    %cst_16 = arith.constant 9.200000e-01 : f32
    %63 = arith.mulf %cst_16, %26 : f32
    %cst_17 = arith.constant 8.000000e-02 : f32
    %64 = arith.mulf %cst_17, %62 : f32
    %65 = arith.addf %63, %64 : f32
    %c0_18 = arith.constant 0 : index
    %c0_19 = arith.constant 0 : index
    %66 = memref.load %arg1[%c0_18, %c0_19] : memref<1x1xf32, #tpu.memory_space<smem>>
    memref.store %65, %arg1[%c0_18, %c0_19] : memref<1x1xf32, #tpu.memory_space<smem>>
    return
  }
}

</mosaic_0001>

<llo_original>
// kernel: tpu_custom_call.1
$region0: #{tpu_custom_call.1}
  #allocation0 [shape = 'u32[]', space=smem, size = 0x4, offset = 0x4, fixed_abs, tag = 'smem constant byte address 0x4 - core index']
  #allocation1 [shape = 'u32[144,128]{1,0:T(1,128)}', space=vmem, size = 0x12000, scoped, tag = 'internal scratch']
  %s0 = inlined_call_operand.hbm [shape: f32[16,11], index: 0, kind: input, shape index: {}]
  %s1 = inlined_call_operand.hbm [shape: f32[1,1], index: 1, kind: output, shape index: {}]
  %s2 = sld [smem:[#allocation0]]
  $region18: #{tpu_custom_call.1} parent=0
    _
  %s4 = ssub.s32 1, %s2
  %s5 = scalar_select 0, %s4, %s2
  $region1: #{tpu_custom_call.1} parent=0
    #allocation2 [shape = 'u8[8192]{0}', space=vmem, size = 0x2000, scoped, tag = 'input window, operand 0, single buffered']
    #allocation3 [shape = 's32[1]{0}', space=sflag, size = 0x4, scoped, tag = 'scoped memory for tpu_custom_call.1']
    #allocation4 [shape = 's32[1]{0}', space=sflag, size = 0x4, scoped, tag = 'scoped memory for tpu_custom_call.1']
    #allocation5 [shape = 'u8[512]{0}', space=smem, size = 0x200, scoped, tag = 'output window, operand 0, single buffered']
    %6 = vsyncpa [#allocation3], 0
    %7 = vsyncpa [#allocation4], 0
    // Predicated region
    $region2: #{tpu_custom_call.1} parent=1 // pred_check
      _
    $region3: #{tpu_custom_call.1} parent=1 // pred_check_branch
      %9 = sbr.rel (0) target = $region5
    $region4: #{tpu_custom_call.1} parent=1 // pred_region
      %s11 = ssub.s32 256, 256
      %12 = vsyncadd [#allocation3], %s11
      %s13 = sshll.u32 [#allocation2], 4
      %s14 = int_to_ptr.vmem [resolvable:$true] %s13
      %19 = dma.hbm_to_vmem [thread:$0]  %s0, 256, %s14, [#allocation3], 128, 128, 8
    $region5: #{tpu_custom_call.1} parent=1 // pred_fallthru
      _
    // Predicated region
    $region6: #{tpu_custom_call.1} parent=1 // pred_check
      _
    $region7: #{tpu_custom_call.1} parent=1 // pred_check_branch
      %21 = sbr.rel (0) target = $region9
    $region8: #{tpu_custom_call.1} parent=1 // pred_region
      %22 = dma.done [#allocation3], 256
    $region9: #{tpu_custom_call.1} parent=1 // pred_fallthru
      _
    %v23 = vld [vmem:[#allocation2] sm:$0xff]
    %v24 = vld [vmem:[#allocation2 + $0x8] sm:$0xff]
    %v25 = vmax.f32 %v23, 0.0
    %v26 = vmax.f32 %v24, 0.0
    %v27 = vand.u32 2147483647, %v23
    %v28 = vand.u32 2147483647, %v24
    %v29 = vsub.f32 0.0, %v27
    %v30 = vsub.f32 0.0, %v28
    %v31 = vmul.f32 %v29, 1.442695
    %v32 = vpow.pop %v31
    %v33 = vmul.f32 %v30, 1.442695
    %v34 = vpow.pop %v33
    %v35 = vadd.f32 %v32, 1.0
    %v36 = vlog2.pop %v35
    %v37 = vmul.f32 %v36, 0.6931472
    %v38 = vmul.f32 -0.5, %v32
    %v39 = vadd.f32 %v38, 1.0
    %v40 = vmul.f32 %v39, %v32
    %v41 = vand.u32 2147483647, %v32
    %vm42 = vcmp.lt.f32.partialorder %v41, 0.0004427343
    %v43 = vsel %vm42, %v40, %v37
    %v44 = vadd.f32 %v34, 1.0
    %v45 = vlog2.pop %v44
    %v46 = vmul.f32 %v45, 0.6931472
    %v47 = vmul.f32 -0.5, %v34
    %v48 = vadd.f32 %v47, 1.0
    %v49 = vmul.f32 %v48, %v34
    %v50 = vand.u32 2147483647, %v34
    %vm51 = vcmp.lt.f32.partialorder %v50, 0.0004427343
    %v52 = vsel %vm51, %v49, %v46
    %v53 = vadd.f32 %v25, %v43
    %v54 = vadd.f32 %v26, %v52
    %v55 = vmul.f32 %v23, 2.0
    %v56 = vmul.f32 %v24, 2.0
    %v57 = vadd.f32 %v55, 1.0
    %v58 = vadd.f32 %v56, 1.0
    %61 = vrot.lane.b32.xlu0 %v57, 127
    %v62 = vpop.permute.xlu0 %61
    %63 = vrot.lane.b32.xlu0 %v58, 127
    %v64 = vpop.permute.xlu0 %63
    %v67 = vmul.f32 %v53, %v62
    %v68 = vmul.f32 %v54, %v64
    %v69 = vmul.f32 %v23, 3.0
    %v70 = vmul.f32 %v24, 3.0
    %73 = vrot.lane.b32.xlu0 %v23, 1
    %v74 = vpop.permute.xlu0 %73
    %75 = vrot.lane.b32.xlu0 %v24, 1
    %v76 = vpop.permute.xlu0 %75
    %v79 = vmul.f32 %v69, %v74
    %v80 = vmul.f32 %v70, %v76
    %83 = vrot.lane.b32.xlu0 %v79, 127
    %v84 = vpop.permute.xlu0 %83
    %85 = vrot.lane.b32.xlu0 %v80, 127
    %v86 = vpop.permute.xlu0 %85
    %v89 = vsub.f32 %v67, %v84
    %v90 = vsub.f32 %v68, %v86
    %93 = vrot.lane.b32.xlu0 %v89, 120
    %v94 = vpop.permute.xlu0 %93
    %95 = vrot.lane.b32.xlu0 %v90, 120
    %v96 = vpop.permute.xlu0 %95
    %vm99 = vcmask 7168
    %v100 = vsel %vm99, %v94, 0.0
    %v101 = vsel %vm99, %v96, 0.0
    %v102 = vadd.f32 %v100, %v101
    %103 = vadd.xlane.f32.xlu0 %v102
    %v104 = vpop.xlane.xlu0 %103
    %v105 = vrot.slane %v104, 4
    %v106 = vadd.f32 %v104, %v105
    %v107 = vrot.slane %v106, 2
    %v108 = vadd.f32 %v106, %v107
    %v109 = vrot.slane %v108, 1
    %v110 = vadd.f32 %v108, %v109
    %s111 = vtos %v110
    %s112 = smul.f32 %s111, 0.0625
    %v113 = vlaneseq
    %v114 = vand.u32 %v113, 127
    %v115 = vcvt.f32.s32.to.zero.pseudo %v23
    %v116 = vcvt.f32.s32.to.zero.pseudo %v24
    %117 = vset.pattern.permute.xlu0 10
    %118 = vperm.xlu0 %117, %v115
    %v119 = vpop.permute.xlu0 %118
    %120 = vset.pattern.permute.xlu0 10
    %121 = vperm.xlu0 %120, %v116
    %v122 = vpop.permute.xlu0 %121
    %vm123 = vcmp.eq.s32.totalorder %v114, %v119
    %vm124 = vcmp.eq.s32.totalorder %v114, %v122
    %v125 = vsel %vm123, 1, 0
    %v126 = vsel %vm124, 1, 0
    %v127 = vcvt.s32.f32 %v125
    %v128 = vcvt.s32.f32 %v126
    %vm129 = vcmask 64512
    %v130 = vsel %vm129, %v23, -inf
    %131 = vmax.xlane.f32.xlu0 %v130
    %v132 = vpop.xlane.xlu0 %131
    %v133 = vsel %vm129, %v24, -inf
    %134 = vmax.xlane.f32.xlu0 %v133
    %v135 = vpop.xlane.xlu0 %134
    %v136 = vsub.f32 %v23, %v132
    %v137 = vsub.f32 %v24, %v135
    %v138 = vmul.f32 %v136, 1.442695
    %v139 = vpow.pop %v138
    %v140 = vmul.f32 %v137, 1.442695
    %v141 = vpow.pop %v140
    %v142 = vsel %vm129, %v139, 0.0
    %143 = vadd.xlane.f32.xlu0 %v142
    %v144 = vpop.xlane.xlu0 %143
    %v145 = vsel %vm129, %v141, 0.0
    %146 = vadd.xlane.f32.xlu0 %v145
    %v147 = vpop.xlane.xlu0 %146
    %v148 = vlog2.pop %v144
    %v149 = vmul.f32 %v148, 0.6931472
    %v150 = vlog2.pop %v147
    %v151 = vmul.f32 %v150, 0.6931472
    %v152 = vadd.f32 %v132, %v149
    %v153 = vadd.f32 %v135, %v151
    %v154 = vmul.f32 %v23, %v127
    %v155 = vmul.f32 %v24, %v128
    %v156 = vsel %vm129, %v154, 0.0
    %157 = vadd.xlane.f32.xlu0 %v156
    %v158 = vpop.xlane.xlu0 %157
    %v159 = vsel %vm129, %v155, 0.0
    %160 = vadd.xlane.f32.xlu0 %v159
    %v161 = vpop.xlane.xlu0 %160
    %v162 = vsub.f32 %v152, %v158
    %v163 = vsub.f32 %v153, %v161
    %vm164 = vcmp.eq.f32.partialorder %v23, 1.0
    %vm165 = vcmp.eq.f32.partialorder %v24, 1.0
    %v166 = vsel %vm164, 1, 0
    %v167 = vsel %vm165, 1, 0
    %v168 = vcvt.s32.f32 %v166
    %v169 = vcvt.s32.f32 %v167
    %v170 = vmul.f32 %v162, %v168
    %v171 = vmul.f32 %v163, %v169
    %174 = vrot.lane.b32.xlu0 %v170, 119
    %v175 = vpop.permute.xlu0 %174
    %176 = vrot.lane.b32.xlu0 %v171, 119
    %v177 = vpop.permute.xlu0 %176
    %v180 = vsel %vm99, %v175, 0.0
    %v181 = vsel %vm99, %v177, 0.0
    %v182 = vadd.f32 %v180, %v181
    %183 = vadd.xlane.f32.xlu0 %v182
    %v184 = vpop.xlane.xlu0 %183
    %v185 = vrot.slane %v184, 4
    %v186 = vadd.f32 %v184, %v185
    %v187 = vrot.slane %v186, 2
    %v188 = vadd.f32 %v186, %v187
    %v189 = vrot.slane %v188, 1
    %v190 = vadd.f32 %v188, %v189
    %s191 = vtos %v190
    %194 = vrot.lane.b32.xlu0 %v168, 119
    %v195 = vpop.permute.xlu0 %194
    %196 = vrot.lane.b32.xlu0 %v169, 119
    %v197 = vpop.permute.xlu0 %196
    %v200 = vsel %vm99, %v195, 0.0
    %v201 = vsel %vm99, %v197, 0.0
    %v202 = vadd.f32 %v200, %v201
    %203 = vadd.xlane.f32.xlu0 %v202
    %v204 = vpop.xlane.xlu0 %203
    %v205 = vrot.slane %v204, 4
    %v206 = vadd.f32 %v204, %v205
    %v207 = vrot.slane %v206, 2
    %v208 = vadd.f32 %v206, %v207
    %v209 = vrot.slane %v208, 1
    %v210 = vadd.f32 %v208, %v209
    %s211 = vtos %v210
    %p212 = scmp.gt.f32.partialorder %s211, 0.0
    %s213 = smax.f32 %s211, 1.0
    %v214 = vstv %s213
    %v215 = vrcp.pop %v214
    %s216 = vtos %v215
    %s217 = smul.f32 %s191, %s216
    %s218 = scalar_select %p212, %s217, 0.0
    %s219 = smul.f32 %s112, 0.92
    %s220 = smul.f32 %s218, 0.08
    %s221 = sadd.f32 %s219, %s220
    %s222 = scalar_lea.smem [#allocation5], 0
    %223 = sst [smem:[%s222]] %s221
    // Predicated region
    $region10: #{tpu_custom_call.1} parent=1 // pred_check
      _
    $region11: #{tpu_custom_call.1} parent=1 // pred_check_branch
      %225 = sbr.rel (0) target = $region13
    $region12: #{tpu_custom_call.1} parent=1 // pred_region
      %s227 = ssub.s32 16, 16
      %228 = vsyncadd [#allocation4], %s227
      %231 = dma.smem_to_hbm [#allocation5], 16, %s1, [#allocation4]
    $region13: #{tpu_custom_call.1} parent=1 // pred_fallthru
      _
    // Predicated region
    $region14: #{tpu_custom_call.1} parent=1 // pred_check
      _
    $region15: #{tpu_custom_call.1} parent=1 // pred_check_branch
      %233 = sbr.rel (0) target = $region17
    $region16: #{tpu_custom_call.1} parent=1 // pred_region
      %234 = dma.done [#allocation4], 16
    $region17: #{tpu_custom_call.1} parent=1 // pred_fallthru
      _
    %235 = sfence
    %236 = vsyncpa [#allocation3], 1
    %237 = vsyncpa [#allocation4], 1

</llo_original>
